<compile_context>
chip_gen: v7x
topology: tpu7x:2x2x1
jax: 0.10.0
libtpu: 0.0.40
codegen_flags: <defaults>
</compile_context>

<pallas_src>
import jax
import jax.numpy as jnp
from jax.experimental import pallas as pl
from jax.experimental.pallas import tpu as pltpu


def outconv_kernel(x_ref, w1_ref, b1_ref, w2_ref, b2_ref, o_ref):
    """One grid step: Nb batch elements x one spatial tile.

    x_ref:  (Nb, C_in, TS)   (lane axis = spatial, lane-dense)
    w1_ref: (C_out, C_in)    b1_ref: (C_out, 1)
    w2_ref: (C_out, C_out)   b2_ref: (C_out, 1)
    o_ref:  (Nb, C_out, TS)
    """
    w1 = w1_ref[...]
    b1 = b1_ref[...]
    w2 = w2_ref[...]
    b2 = b2_ref[...]

    nb = x_ref.shape[0]
    # Small, statically-unrolled loop over the batch sub-block (nb is capped at
    # 8); each iteration is a plain 2-D channel matmul that maps cleanly onto
    # the MXU.  The MXU / VPU work is free filler under the HBM DMA.
    for b in range(nb):
        x = x_ref[b]                                            # (C_in, TS)
        # conv1 (1x1 conv == channel matmul) + bias; f32 accumulation.
        y = jnp.dot(w1, x, preferred_element_type=jnp.float32) + b1
        # Swish: y * sigmoid(y).  exp lives on the EUP slot; the kernel is
        # HBM-bound so the remaining VPU work is hidden under the DMA.
        y = y * jax.nn.sigmoid(y)
        # conv2 (1x1 conv) + bias.  Cast back to the weight dtype so bf16
        # inputs keep full MXU throughput (no-op for f32).
        out = jnp.dot(w2, y.astype(w2.dtype),
                      preferred_element_type=jnp.float32) + b2
        o_ref[b] = out.astype(o_ref.dtype)


def _round_up(x, m):
    return ((x + m - 1) // m) * m


def _choose_tiling(N, C_in, C_out, S, dtype_bytes, *, ts_target=32768,
                   step_bytes_target=2 * 1024 * 1024, max_nb=8, min_steps=8):
    """Pick (batch block nb, spatial tile ts, spatial chunk count n_s)."""
    # --- spatial tile -------------------------------------------------------
    # Cap the tile so a double-buffered (input + output) block pair stays well
    # under v7x's 64 MiB physical VMEM even for wide channel counts.
    vmem_pair_budget = 24 * 1024 * 1024
    ts_cap = max(128, vmem_pair_budget // (2 * (C_in + C_out) * dtype_bytes))
    ts_target = max(128, min(ts_target, (ts_cap // 128) * 128))

    if S % 128 != 0:
        # "block == full array dim" exemption: one spatial chunk, no HBM pad
        # copy, no overshoot.
        ts, n_s = S, 1
    else:
        # Pick the chunk count first, then round the tile up to 128 lanes.
        n_s = max(1, pl.cdiv(S, ts_target))
        ts = _round_up(pl.cdiv(S, n_s), 128)      # multiple of 128, ts <= S
        n_s = pl.cdiv(S, ts)                      # actual chunk count

    # --- batch block --------------------------------------------------------
    # Amortize the ~0.35 us per-grid-step overhead when per-step traffic is
    # small (tiny images), capped so the kernel body stays a short unrolled
    # loop and nb divides N.
    per_batch_step_bytes = (C_in + 2 * C_out) * ts * dtype_bytes
    nb = max(1, min(N, max_nb,
                    step_bytes_target // max(1, per_batch_step_bytes)))
    while N % nb != 0:
        nb -= 1

    # Keep enough grid steps for v7x's two TensorCores when the problem is big
    # enough for that to matter.
    total_bytes = N * (C_in + 2 * C_out) * S * dtype_bytes
    if total_bytes >= min_steps * step_bytes_target:
        while nb > 1 and (N // nb) * n_s < min_steps:
            nb = max(1, nb // 2)
            while N % nb != 0:
                nb -= 1
    return nb, ts, n_s


def outconv_forward(x_nchw, w1, b1, w2, b2, *, ts_target=32768):
    """x_nchw: (N, C_in, H, W); w1: (C_out, C_in); b1: (C_out,);
    w2: (C_out, C_out); b2: (C_out,).

    Works for f32 or bf16 inputs (bf16 halves HBM traffic; accumulation is
    always f32 inside the kernel).
    """
    N, C_in, H, W = x_nchw.shape
    C_out = w1.shape[0]
    S = H * W
    dtype_bytes = jnp.dtype(x_nchw.dtype).itemsize

    # NCHW -> (N, C_in, S): pure reshape, no data movement.
    x3 = x_nchw.reshape(N, C_in, S)
    # Biases as (C_out, 1) columns so they broadcast over the lane axis.
    b1_c = b1.reshape(C_out, 1)
    b2_c = b2.reshape(C_out, 1)

    nb, ts, n_s = _choose_tiling(N, C_in, C_out, S, dtype_bytes,
                                 ts_target=ts_target)
    grid = (N // nb, n_s)

    cost = pl.CostEstimate(
        flops=2 * N * S * (C_in * C_out + C_out * C_out),
        transcendentals=N * S * C_out,
        bytes_accessed=N * S * (C_in + C_out) * dtype_bytes
        + (C_in * C_out + C_out * C_out + 2 * C_out) * dtype_bytes,
    )

    out3 = pl.pallas_call(
        outconv_kernel,
        out_shape=jax.ShapeDtypeStruct((N, C_out, S), x_nchw.dtype),
        grid_spec=pltpu.PrefetchScalarGridSpec(
            num_scalar_prefetch=0,
            grid=grid,
            in_specs=[
                pl.BlockSpec((nb, C_in, ts), lambda n, s: (n, 0, s)),
                pl.BlockSpec((C_out, C_in), lambda n, s: (0, 0)),
                pl.BlockSpec((C_out, 1), lambda n, s: (0, 0)),
                pl.BlockSpec((C_out, C_out), lambda n, s: (0, 0)),
                pl.BlockSpec((C_out, 1), lambda n, s: (0, 0)),
            ],
            out_specs=pl.BlockSpec((nb, C_out, ts), lambda n, s: (n, 0, s)),
        ),
        compiler_params=pltpu.CompilerParams(
            dimension_semantics=("parallel", "parallel"),
            # Plenty of headroom for the chosen tiles; stays under v7x's
            # 64 MiB physical VMEM while raising v5e's 16 MiB scoped default.
            vmem_limit_bytes=48 * 1024 * 1024,
        ),
        cost_estimate=cost,
    )(x3, w1, b1_c, w2, b2_c)

    return out3.reshape(N, C_out, H, W)


def reference_forward(x_nchw, w1, b1, w2, b2):
    """Pure-JAX reference mirroring the PyTorch module (NCHW, 1x1 convs)."""
    y = jnp.einsum("nchw,oc->nohw", x_nchw, w1) + b1[None, :, None, None]
    y = y * jax.nn.sigmoid(y)
    out = jnp.einsum("nchw,oc->nohw", y, w2) + b2[None, :, None, None]
    return out


if __name__ == "__main__":
    # Small deterministic problem: batch=2, in_channels=4, out_channels=8,
    # 16x16 spatial.
    N, C_in, C_out, H, W = 2, 4, 8, 16, 16
    key = jax.random.PRNGKey(0)
    kx, kw1, kb1, kw2, kb2 = jax.random.split(key, 5)

    x = jax.random.normal(kx, (N, C_in, H, W), dtype=jnp.float32)
    # Conv2d(in, out, kernel_size=1) weight (C_out, C_in, 1, 1) -> (C_out, C_in)
    w1 = jax.random.normal(kw1, (C_out, C_in), dtype=jnp.float32) * 0.1
    b1 = jax.random.normal(kb1, (C_out,), dtype=jnp.float32) * 0.1
    # conv2d(out, out, 1, 1, 0, bias=True): (C_out, C_out)
    w2 = jax.random.normal(kw2, (C_out, C_out), dtype=jnp.float32) * 0.1
    b2 = jax.random.normal(kb2, (C_out,), dtype=jnp.float32) * 0.1

    out = outconv_forward(x, w1, b1, w2, b2)
    out = jax.block_until_ready(out)

    ref = reference_forward(x, w1, b1, w2, b2)
    assert out.shape == (N, C_out, H, W), out.shape
    assert jnp.allclose(out, ref, atol=1e-5, rtol=1e-5), float(
        jnp.max(jnp.abs(out - ref)))

    print("KERNEL_OK")
</pallas_src>

<mosaic_0001>
module attributes {stable_mosaic.version = 11 : i64} {
  func.func @outconv_kernel(%arg0: i32, %arg1: i32, %arg2: memref<2x4x256xf32, #tpu.memory_space<vmem>>, %arg3: memref<8x4xf32, #tpu.memory_space<vmem>>, %arg4: memref<8x1xf32, #tpu.memory_space<vmem>>, %arg5: memref<8x8xf32, #tpu.memory_space<vmem>>, %arg6: memref<8x1xf32, #tpu.memory_space<vmem>>, %arg7: memref<2x8x256xf32, #tpu.memory_space<vmem>>) attributes {dimension_semantics = [#tpu.dimension_semantics<parallel>, #tpu.dimension_semantics<parallel>], iteration_bounds = array<i64: 1, 1>, scalar_prefetch = 0 : i64, scratch_operands = 0 : i64, tpu.core_type = #tpu.core_type<tc>, window_params = [{transform_indices = @transform_0, window_bounds = array<i64: 2, 4, 256>}, {pipeline_mode = #tpu.pipeline_mode<synchronous>, transform_indices = @transform_1, window_bounds = array<i64: 8, 4>}, {pipeline_mode = #tpu.pipeline_mode<synchronous>, transform_indices = @transform_2, window_bounds = array<i64: 8, 1>}, {pipeline_mode = #tpu.pipeline_mode<synchronous>, transform_indices = @transform_3, window_bounds = array<i64: 8, 8>}, {pipeline_mode = #tpu.pipeline_mode<synchronous>, transform_indices = @transform_4, window_bounds = array<i64: 8, 1>}, {transform_indices = @transform_5, window_bounds = array<i64: 2, 8, 256>}]} {
    %c0 = arith.constant 0 : index
    %c0_0 = arith.constant 0 : index
    %0 = vector.load %arg3[%c0, %c0_0] : memref<8x4xf32, #tpu.memory_space<vmem>>, vector<8x4xf32>
    %c0_1 = arith.constant 0 : index
    %c0_2 = arith.constant 0 : index
    %1 = vector.load %arg4[%c0_1, %c0_2] : memref<8x1xf32, #tpu.memory_space<vmem>>, vector<8x1xf32>
    %c0_3 = arith.constant 0 : index
    %c0_4 = arith.constant 0 : index
    %2 = vector.load %arg5[%c0_3, %c0_4] : memref<8x8xf32, #tpu.memory_space<vmem>>, vector<8x8xf32>
    %c0_5 = arith.constant 0 : index
    %c0_6 = arith.constant 0 : index
    %3 = vector.load %arg6[%c0_5, %c0_6] : memref<8x1xf32, #tpu.memory_space<vmem>>, vector<8x1xf32>
    %c0_7 = arith.constant 0 : index
    %c0_8 = arith.constant 0 : index
    %c0_9 = arith.constant 0 : index
    %4 = vector.load %arg2[%c0_7, %c0_8, %c0_9] : memref<2x4x256xf32, #tpu.memory_space<vmem>>, vector<1x4x256xf32>
    %5 = vector.shape_cast %4 : vector<1x4x256xf32> to vector<4x256xf32>
    %cst = arith.constant dense<0.000000e+00> : vector<8x256xf32>
    %6 = tpu.matmul %0, %5, %cst {dimension_numbers = #tpu.dot_dimension_numbers<[1], [0], [0], [1], [0, 0, 1, 1], [], []>} : vector<8x4xf32>, vector<4x256xf32>, vector<8x256xf32> -> vector<8x256xf32>
    %7 = vector.broadcast %1 : vector<8x1xf32> to vector<8x256xf32>
    %8 = arith.addf %6, %7 : vector<8x256xf32>
    %9 = arith.negf %8 : vector<8x256xf32>
    %10 = math.exp %9 : vector<8x256xf32>
    %cst_10 = arith.constant 1.000000e+00 : f32
    %11 = vector.broadcast %cst_10 : f32 to vector<8x256xf32>
    %12 = arith.addf %11, %10 : vector<8x256xf32>
    %13 = arith.divf %11, %12 : vector<8x256xf32>
    %14 = arith.mulf %8, %13 : vector<8x256xf32>
    %cst_11 = arith.constant dense<0.000000e+00> : vector<8x256xf32>
    %15 = tpu.matmul %2, %14, %cst_11 {dimension_numbers = #tpu.dot_dimension_numbers<[1], [0], [0], [1], [0, 0, 1, 1], [], []>} : vector<8x8xf32>, vector<8x256xf32>, vector<8x256xf32> -> vector<8x256xf32>
    %16 = vector.broadcast %3 : vector<8x1xf32> to vector<8x256xf32>
    %17 = arith.addf %15, %16 : vector<8x256xf32>
    %c0_12 = arith.constant 0 : index
    %c0_13 = arith.constant 0 : index
    %c0_14 = arith.constant 0 : index
    %18 = vector.load %arg7[%c0_12, %c0_13, %c0_14] : memref<2x8x256xf32, #tpu.memory_space<vmem>>, vector<1x8x256xf32>
    %19 = vector.shape_cast %18 : vector<1x8x256xf32> to vector<8x256xf32>
    %20 = vector.shape_cast %17 : vector<8x256xf32> to vector<1x8x256xf32>
    tpu.vector_store %arg7[%c0_12, %c0_13, %c0_14], %20 {strides = array<i32>} : memref<2x8x256xf32, #tpu.memory_space<vmem>>, vector<1x8x256xf32>,
    %c1 = arith.constant 1 : index
    %c0_15 = arith.constant 0 : index
    %c0_16 = arith.constant 0 : index
    %21 = vector.load %arg2[%c1, %c0_15, %c0_16] : memref<2x4x256xf32, #tpu.memory_space<vmem>>, vector<1x4x256xf32>
    %22 = vector.shape_cast %21 : vector<1x4x256xf32> to vector<4x256xf32>
    %cst_17 = arith.constant dense<0.000000e+00> : vector<8x256xf32>
    %23 = tpu.matmul %0, %22, %cst_17 {dimension_numbers = #tpu.dot_dimension_numbers<[1], [0], [0], [1], [0, 0, 1, 1], [], []>} : vector<8x4xf32>, vector<4x256xf32>, vector<8x256xf32> -> vector<8x256xf32>
    %24 = vector.broadcast %1 : vector<8x1xf32> to vector<8x256xf32>
    %25 = arith.addf %23, %24 : vector<8x256xf32>
    %26 = arith.negf %25 : vector<8x256xf32>
    %27 = math.exp %26 : vector<8x256xf32>
    %cst_18 = arith.constant 1.000000e+00 : f32
    %28 = vector.broadcast %cst_18 : f32 to vector<8x256xf32>
    %29 = arith.addf %28, %27 : vector<8x256xf32>
    %30 = arith.divf %28, %29 : vector<8x256xf32>
    %31 = arith.mulf %25, %30 : vector<8x256xf32>
    %cst_19 = arith.constant dense<0.000000e+00> : vector<8x256xf32>
    %32 = tpu.matmul %2, %31, %cst_19 {dimension_numbers = #tpu.dot_dimension_numbers<[1], [0], [0], [1], [0, 0, 1, 1], [], []>} : vector<8x8xf32>, vector<8x256xf32>, vector<8x256xf32> -> vector<8x256xf32>
    %33 = vector.broadcast %3 : vector<8x1xf32> to vector<8x256xf32>
    %34 = arith.addf %32, %33 : vector<8x256xf32>
    %c1_20 = arith.constant 1 : index
    %c0_21 = arith.constant 0 : index
    %c0_22 = arith.constant 0 : index
    %35 = vector.load %arg7[%c1_20, %c0_21, %c0_22] : memref<2x8x256xf32, #tpu.memory_space<vmem>>, vector<1x8x256xf32>
    %36 = vector.shape_cast %35 : vector<1x8x256xf32> to vector<8x256xf32>
    %37 = vector.shape_cast %34 : vector<8x256xf32> to vector<1x8x256xf32>
    tpu.vector_store %arg7[%c1_20, %c0_21, %c0_22], %37 {strides = array<i32>} : memref<2x8x256xf32, #tpu.memory_space<vmem>>, vector<1x8x256xf32>,
    return
  }
  func.func @transform_0(%arg0: i32, %arg1: i32) -> (i32, i32, i32) {
    %c0_i32 = arith.constant 0 : i32
    %c0_i32_0 = arith.constant 0 : i32
    return %arg0, %c0_i32, %arg1 : i32, i32, i32
  }
  func.func @transform_1(%arg0: i32, %arg1: i32) -> (i32, i32) {
    %c0_i32 = arith.constant 0 : i32
    %c0_i32_0 = arith.constant 0 : i32
    %c0_i32_1 = arith.constant 0 : i32
    return %c0_i32, %c0_i32_0 : i32, i32
  }
  func.func @transform_2(%arg0: i32, %arg1: i32) -> (i32, i32) {
    %c0_i32 = arith.constant 0 : i32
    %c0_i32_0 = arith.constant 0 : i32
    %c0_i32_1 = arith.constant 0 : i32
    return %c0_i32, %c0_i32_0 : i32, i32
  }
  func.func @transform_3(%arg0: i32, %arg1: i32) -> (i32, i32) {
    %c0_i32 = arith.constant 0 : i32
    %c0_i32_0 = arith.constant 0 : i32
    %c0_i32_1 = arith.constant 0 : i32
    return %c0_i32, %c0_i32_0 : i32, i32
  }
  func.func @transform_4(%arg0: i32, %arg1: i32) -> (i32, i32) {
    %c0_i32 = arith.constant 0 : i32
    %c0_i32_0 = arith.constant 0 : i32
    %c0_i32_1 = arith.constant 0 : i32
    return %c0_i32, %c0_i32_0 : i32, i32
  }
  func.func @transform_5(%arg0: i32, %arg1: i32) -> (i32, i32, i32) {
    %c0_i32 = arith.constant 0 : i32
    %c0_i32_0 = arith.constant 0 : i32
    return %arg0, %c0_i32, %arg1 : i32, i32, i32
  }
}

</mosaic_0001>

<llo_original>
// kernel: tpu_custom_call.1
$region0: #{tpu_custom_call.1}
  #allocation0 [shape = 'u32[]', space=smem, size = 0x4, offset = 0x4, fixed_abs, tag = 'smem constant byte address 0x4 - core index']
  #allocation1 [shape = 'u32[144,128]{1,0:T(1,128)}', space=vmem, size = 0x12000, scoped, tag = 'internal scratch']
  %s0 = inlined_call_operand.vmem [shape: f32[2,4,256], index: 0, kind: input, shape index: {}]
  %s1 = inlined_call_operand.vmem [shape: f32[8,4], index: 1, kind: input, shape index: {}]
  %s2 = inlined_call_operand.vmem [shape: f32[8,1], index: 2, kind: input, shape index: {}]
  %s3 = inlined_call_operand.vmem [shape: f32[8,8], index: 3, kind: input, shape index: {}]
  %s4 = inlined_call_operand.vmem [shape: f32[8,1], index: 4, kind: input, shape index: {}]
  %s5 = inlined_call_operand.hbm [shape: f32[2,8,256], index: 5, kind: output, shape index: {}]
  %s6 = sld [smem:[#allocation0]]
  $region30: #{tpu_custom_call.1} parent=0
    _
  %s8 = ssub.s32 1, %s6
  %s9 = scalar_select 0, %s8, %s6
  $region1: #{tpu_custom_call.1} parent=0
    #allocation2 [shape = 'u8[16384]{0}', space=vmem, size = 0x4000, scoped, tag = 'output window, operand 0, single buffered']
    #allocation3 [shape = 's32[1]{0}', space=sflag, size = 0x4, scoped, tag = 'scoped memory for tpu_custom_call.1']
    %10 = vsyncpa [#allocation3], 0
    // Predicated region
    $region2: #{tpu_custom_call.1} parent=1 // pred_check
      _
    $region3: #{tpu_custom_call.1} parent=1 // pred_check_branch
      %12 = sbr.rel (0) target = $region5
    $region4: #{tpu_custom_call.1} parent=1 // pred_region
      _
    $region5: #{tpu_custom_call.1} parent=1 // pred_fallthru
      _
    // Predicated region
    $region6: #{tpu_custom_call.1} parent=1 // pred_check
      _
    $region7: #{tpu_custom_call.1} parent=1 // pred_check_branch
      %14 = sbr.rel (0) target = $region9
    $region8: #{tpu_custom_call.1} parent=1 // pred_region
      _
    $region9: #{tpu_custom_call.1} parent=1 // pred_fallthru
      _
    // Predicated region
    $region10: #{tpu_custom_call.1} parent=1 // pred_check
      _
    $region11: #{tpu_custom_call.1} parent=1 // pred_check_branch
      %16 = sbr.rel (0) target = $region13
    $region12: #{tpu_custom_call.1} parent=1 // pred_region
      _
    $region13: #{tpu_custom_call.1} parent=1 // pred_fallthru
      _
    // Predicated region
    $region14: #{tpu_custom_call.1} parent=1 // pred_check
      _
    $region15: #{tpu_custom_call.1} parent=1 // pred_check_branch
      %18 = sbr.rel (0) target = $region17
    $region16: #{tpu_custom_call.1} parent=1 // pred_region
      _
    $region17: #{tpu_custom_call.1} parent=1 // pred_fallthru
      _
    // Predicated region
    $region18: #{tpu_custom_call.1} parent=1 // pred_check
      _
    $region19: #{tpu_custom_call.1} parent=1 // pred_check_branch
      %20 = sbr.rel (0) target = $region21
    $region20: #{tpu_custom_call.1} parent=1 // pred_region
      _
    $region21: #{tpu_custom_call.1} parent=1 // pred_fallthru
      _
    %v21 = vld [vmem:[%s1] sm:$0xff]
    %v22 = vld [vmem:[%s2] sm:$0xff]
    %v23 = vld [vmem:[%s3] sm:$0xff]
    %v24 = vld [vmem:[%s4] sm:$0xff]
    %v25 = vld [vmem:[%s0] sm:$0xff]
    %27 = vset.pattern.permute.xlu0 0
    %28 = vperm.xlu0 %27, %v22
    %v29 = vpop.permute.xlu0 %28
    %v32 = vcombine.high %v25, %v25
    %vm33 = vcmask 31744
    %v35 = vsel %vm33, %v21, 0
    %vm37 = vcmask 1043456
    %v38 = vsel %vm37, %v25, 0
    %v40 = vsel %vm37, %v32, 0
    %42 = vmatprep.subr.mxu0 %v40
    %43 = vmatpush1.msra.mxu0 %v38
    %44 = vmatprep.subr.mxu0 0.0
    %45 = vmatpush1.msra.mxu0 0.0
    %46 = vmatprep.subr.mxu0 0.0
    %47 = vmatpush1.msra.mxu0 0.0
    %48 = vmatprep.subr.mxu0 0.0
    %49 = vmatpush1.msra.mxu0 0.0
    %50 = vmatprep.subr.mxu0 0.0
    %51 = vmatpush1.msra.mxu0 0.0
    %52 = vmatprep.subr.mxu0 0.0
    %53 = vmatpush1.msra.mxu0 0.0
    %54 = vmatprep.subr.mxu0 0.0
    %55 = vmatpush1.msra.mxu0 0.0
    %56 = vmatprep.subr.mxu0 0.0
    %57 = vmatpush1.msra.mxu0 0.0
    %58 = vmatprep.subr.mxu0 0.0
    %59 = vmatpush1.msra.mxu0 0.0
    %60 = vmatprep.subr.mxu0 0.0
    %61 = vmatpush1.msra.mxu0 0.0
    %62 = vmatprep.subr.mxu0 0.0
    %63 = vmatpush1.msra.mxu0 0.0
    %64 = vmatprep.subr.mxu0 0.0
    %65 = vmatpush1.msra.mxu0 0.0
    %66 = vmatprep.subr.mxu0 0.0
    %67 = vmatpush1.msra.mxu0 0.0
    %68 = vmatprep.subr.mxu0 0.0
    %69 = vmatpush1.msra.mxu0 0.0
    %70 = vmatprep.subr.mxu0 0.0
    %71 = vmatpush1.msra.mxu0 0.0
    %72 = vmatprep.subr.mxu0 0.0
    %73 = vmatpush1.msra.mxu0 0.0
    %74 = vmatprep.subr.mxu0 0.0
    %75 = vmatpush1.msra.mxu0 0.0
    %76 = vmatprep.subr.mxu0 0.0
    %77 = vmatpush1.msra.mxu0 0.0
    %78 = vmatprep.subr.mxu0 0.0
    %79 = vmatpush1.msra.mxu0 0.0
    %80 = vmatprep.subr.mxu0 0.0
    %81 = vmatpush1.msra.mxu0 0.0
    %82 = vmatprep.subr.mxu0 0.0
    %83 = vmatpush1.msra.mxu0 0.0
    %84 = vmatprep.subr.mxu0 0.0
    %85 = vmatpush1.msra.mxu0 0.0
    %86 = vmatprep.subr.mxu0 0.0
    %87 = vmatpush1.msra.mxu0 0.0
    %88 = vmatprep.subr.mxu0 0.0
    %89 = vmatpush1.msra.mxu0 0.0
    %90 = vmatprep.subr.mxu0 0.0
    %91 = vmatpush1.msra.mxu0 0.0
    %92 = vmatprep.subr.mxu0 0.0
    %93 = vmatpush1.msra.mxu0 0.0
    %94 = vmatprep.subr.mxu0 0.0
    %95 = vmatpush1.msra.mxu0 0.0
    %96 = vmatprep.subr.mxu0 0.0
    %97 = vmatpush1.msra.mxu0 0.0
    %98 = vmatprep.subr.mxu0 0.0
    %99 = vmatpush1.msra.mxu0 0.0
    %100 = vmatprep.subr.mxu0 0.0
    %101 = vmatpush1.msra.mxu0 0.0
    %102 = vmatprep.subr.mxu0 0.0
    %103 = vmatpush1.msra.mxu0 0.0
    %104 = vmatprep.subr.mxu0 0.0
    %105 = vmatpush1.msra.mxu0 0.0
    %106 = vmatprep.mubr.f32.mxu0 0.0
    %107 = vmatmul.mubr.f32.gmra.mrb[0].mxu0 %v35
    %v108 = vpop.f32.mrb[0].mxu0
    %v109 = vadd.f32 %v29, %v108
    %v110 = vpop.f32.mrb[0].mxu0
    %v111 = vadd.f32 %v29, %v110
    %112 = vdwg.mxu0
    %v113 = vxor.u32 %v109, 2147483648
    %v114 = vxor.u32 %v111, 2147483648
    %v115 = vmul.f32 %v113, 1.442695
    %v116 = vpow.pop %v115
    %v117 = vmul.f32 %v114, 1.442695
    %v118 = vpow.pop %v117
    %v119 = vadd.f32 %v116, 1.0
    %v120 = vadd.f32 %v118, 1.0
    %v121 = vrcp.pop %v119
    %v122 = vmul.f32 1.0, %v121
    %v123 = vrcp.pop %v120
    %v124 = vmul.f32 1.0, %v123
    %v125 = vmul.f32 %v109, %v122
    %v126 = vmul.f32 %v111, %v124
    %128 = vset.pattern.permute.xlu0 0
    %129 = vperm.xlu0 %128, %v24
    %v130 = vpop.permute.xlu0 %129
    %vm132 = vcmask 64512
    %v134 = vsel %vm132, %v23, 0
    %136 = vmatprep.subr.mxu0 %v126
    %137 = vmatpush1.msra.mxu0 %v125
    %138 = vmatprep.subr.mxu0 0.0
    %139 = vmatpush1.msra.mxu0 0.0
    %140 = vmatprep.subr.mxu0 0.0
    %141 = vmatpush1.msra.mxu0 0.0
    %142 = vmatprep.subr.mxu0 0.0
    %143 = vmatpush1.msra.mxu0 0.0
    %144 = vmatprep.subr.mxu0 0.0
    %145 = vmatpush1.msra.mxu0 0.0
    %146 = vmatprep.subr.mxu0 0.0
    %147 = vmatpush1.msra.mxu0 0.0
    %148 = vmatprep.subr.mxu0 0.0
    %149 = vmatpush1.msra.mxu0 0.0
    %150 = vmatprep.subr.mxu0 0.0
    %151 = vmatpush1.msra.mxu0 0.0
    %152 = vmatprep.subr.mxu0 0.0
    %153 = vmatpush1.msra.mxu0 0.0
    %154 = vmatprep.subr.mxu0 0.0
    %155 = vmatpush1.msra.mxu0 0.0
    %156 = vmatprep.subr.mxu0 0.0
    %157 = vmatpush1.msra.mxu0 0.0
    %158 = vmatprep.subr.mxu0 0.0
    %159 = vmatpush1.msra.mxu0 0.0
    %160 = vmatprep.subr.mxu0 0.0
    %161 = vmatpush1.msra.mxu0 0.0
    %162 = vmatprep.subr.mxu0 0.0
    %163 = vmatpush1.msra.mxu0 0.0
    %164 = vmatprep.subr.mxu0 0.0
    %165 = vmatpush1.msra.mxu0 0.0
    %166 = vmatprep.subr.mxu0 0.0
    %167 = vmatpush1.msra.mxu0 0.0
    %168 = vmatprep.subr.mxu0 0.0
    %169 = vmatpush1.msra.mxu0 0.0
    %170 = vmatprep.subr.mxu0 0.0
    %171 = vmatpush1.msra.mxu0 0.0
    %172 = vmatprep.subr.mxu0 0.0
    %173 = vmatpush1.msra.mxu0 0.0
    %174 = vmatprep.subr.mxu0 0.0
    %175 = vmatpush1.msra.mxu0 0.0
    %176 = vmatprep.subr.mxu0 0.0
    %177 = vmatpush1.msra.mxu0 0.0
    %178 = vmatprep.subr.mxu0 0.0
    %179 = vmatpush1.msra.mxu0 0.0
    %180 = vmatprep.subr.mxu0 0.0
    %181 = vmatpush1.msra.mxu0 0.0
    %182 = vmatprep.subr.mxu0 0.0
    %183 = vmatpush1.msra.mxu0 0.0
    %184 = vmatprep.subr.mxu0 0.0
    %185 = vmatpush1.msra.mxu0 0.0
    %186 = vmatprep.subr.mxu0 0.0
    %187 = vmatpush1.msra.mxu0 0.0
    %188 = vmatprep.subr.mxu0 0.0
    %189 = vmatpush1.msra.mxu0 0.0
    %190 = vmatprep.subr.mxu0 0.0
    %191 = vmatpush1.msra.mxu0 0.0
    %192 = vmatprep.subr.mxu0 0.0
    %193 = vmatpush1.msra.mxu0 0.0
    %194 = vmatprep.subr.mxu0 0.0
    %195 = vmatpush1.msra.mxu0 0.0
    %196 = vmatprep.subr.mxu0 0.0
    %197 = vmatpush1.msra.mxu0 0.0
    %198 = vmatprep.subr.mxu0 0.0
    %199 = vmatpush1.msra.mxu0 0.0
    %200 = vmatprep.mubr.f32.mxu0 0.0
    %201 = vmatmul.mubr.f32.gmra.mrb[0].mxu0 %v134
    %v202 = vpop.f32.mrb[0].mxu0
    %v203 = vadd.f32 %v130, %v202
    %v204 = vpop.f32.mrb[0].mxu0
    %v205 = vadd.f32 %v130, %v204
    %206 = vdwg.mxu0
    %207 = vst [vmem:[#allocation2] sm:$0xff] %v203
    %208 = vst [vmem:[#allocation2 + $0x8] sm:$0xff] %v205
    %s209 = scalar_lea.vmem %s0, 8
    %v210 = vld [vmem:[%s209] sm:$0xff]
    %v212 = vcombine.high %v210, %v210
    %v213 = vsel %vm37, %v210, 0
    %v215 = vsel %vm37, %v212, 0
    %217 = vmatprep.subr.mxu0 %v215
    %218 = vmatpush1.msra.mxu0 %v213
    %219 = vmatprep.subr.mxu0 0.0
    %220 = vmatpush1.msra.mxu0 0.0
    %221 = vmatprep.subr.mxu0 0.0
    %222 = vmatpush1.msra.mxu0 0.0
    %223 = vmatprep.subr.mxu0 0.0
    %224 = vmatpush1.msra.mxu0 0.0
    %225 = vmatprep.subr.mxu0 0.0
    %226 = vmatpush1.msra.mxu0 0.0
    %227 = vmatprep.subr.mxu0 0.0
    %228 = vmatpush1.msra.mxu0 0.0
    %229 = vmatprep.subr.mxu0 0.0
    %230 = vmatpush1.msra.mxu0 0.0
    %231 = vmatprep.subr.mxu0 0.0
    %232 = vmatpush1.msra.mxu0 0.0
    %233 = vmatprep.subr.mxu0 0.0
    %234 = vmatpush1.msra.mxu0 0.0
    %235 = vmatprep.subr.mxu0 0.0
    %236 = vmatpush1.msra.mxu0 0.0
    %237 = vmatprep.subr.mxu0 0.0
    %238 = vmatpush1.msra.mxu0 0.0
    %239 = vmatprep.subr.mxu0 0.0
    %240 = vmatpush1.msra.mxu0 0.0
    %241 = vmatprep.subr.mxu0 0.0
    %242 = vmatpush1.msra.mxu0 0.0
    %243 = vmatprep.subr.mxu0 0.0
    %244 = vmatpush1.msra.mxu0 0.0
    %245 = vmatprep.subr.mxu0 0.0
    %246 = vmatpush1.msra.mxu0 0.0
    %247 = vmatprep.subr.mxu0 0.0
    %248 = vmatpush1.msra.mxu0 0.0
    %249 = vmatprep.subr.mxu0 0.0
    %250 = vmatpush1.msra.mxu0 0.0
    %251 = vmatprep.subr.mxu0 0.0
    %252 = vmatpush1.msra.mxu0 0.0
    %253 = vmatprep.subr.mxu0 0.0
    %254 = vmatpush1.msra.mxu0 0.0
    %255 = vmatprep.subr.mxu0 0.0
    %256 = vmatpush1.msra.mxu0 0.0
    %257 = vmatprep.subr.mxu0 0.0
    %258 = vmatpush1.msra.mxu0 0.0
    %259 = vmatprep.subr.mxu0 0.0
    %260 = vmatpush1.msra.mxu0 0.0
    %261 = vmatprep.subr.mxu0 0.0
    %262 = vmatpush1.msra.mxu0 0.0
    %263 = vmatprep.subr.mxu0 0.0
    %264 = vmatpush1.msra.mxu0 0.0
    %265 = vmatprep.subr.mxu0 0.0
    %266 = vmatpush1.msra.mxu0 0.0
    %267 = vmatprep.subr.mxu0 0.0
    %268 = vmatpush1.msra.mxu0 0.0
    %269 = vmatprep.subr.mxu0 0.0
    %270 = vmatpush1.msra.mxu0 0.0
    %271 = vmatprep.subr.mxu0 0.0
    %272 = vmatpush1.msra.mxu0 0.0
    %273 = vmatprep.subr.mxu0 0.0
    %274 = vmatpush1.msra.mxu0 0.0
    %275 = vmatprep.subr.mxu0 0.0
    %276 = vmatpush1.msra.mxu0 0.0
    %277 = vmatprep.subr.mxu0 0.0
    %278 = vmatpush1.msra.mxu0 0.0
    %279 = vmatprep.subr.mxu0 0.0
    %280 = vmatpush1.msra.mxu0 0.0
    %281 = vmatprep.mubr.f32.mxu0 0.0
    %282 = vmatmul.mubr.f32.gmra.mrb[0].mxu0 %v35
    %v283 = vpop.f32.mrb[0].mxu0
    %v284 = vadd.f32 %v29, %v283
    %v285 = vpop.f32.mrb[0].mxu0
    %v286 = vadd.f32 %v29, %v285
    %287 = vdwg.mxu0
    %v288 = vxor.u32 %v284, 2147483648
    %v289 = vxor.u32 %v286, 2147483648
    %v290 = vmul.f32 %v288, 1.442695
    %v291 = vpow.pop %v290
    %v292 = vmul.f32 %v289, 1.442695
    %v293 = vpow.pop %v292
    %v294 = vadd.f32 %v291, 1.0
    %v295 = vadd.f32 %v293, 1.0
    %v296 = vrcp.pop %v294
    %v297 = vmul.f32 1.0, %v296
    %v298 = vrcp.pop %v295
    %v299 = vmul.f32 1.0, %v298
    %v300 = vmul.f32 %v284, %v297
    %v301 = vmul.f32 %v286, %v299
    %302 = vmatprep.subr.mxu0 %v301
    %303 = vmatpush1.msra.mxu0 %v300
    %304 = vmatprep.subr.mxu0 0.0
    %305 = vmatpush1.msra.mxu0 0.0
    %306 = vmatprep.subr.mxu0 0.0
    %307 = vmatpush1.msra.mxu0 0.0
    %308 = vmatprep.subr.mxu0 0.0
    %309 = vmatpush1.msra.mxu0 0.0
    %310 = vmatprep.subr.mxu0 0.0
    %311 = vmatpush1.msra.mxu0 0.0
    %312 = vmatprep.subr.mxu0 0.0
    %313 = vmatpush1.msra.mxu0 0.0
    %314 = vmatprep.subr.mxu0 0.0
    %315 = vmatpush1.msra.mxu0 0.0
    %316 = vmatprep.subr.mxu0 0.0
    %317 = vmatpush1.msra.mxu0 0.0
    %318 = vmatprep.subr.mxu0 0.0
    %319 = vmatpush1.msra.mxu0 0.0
    %320 = vmatprep.subr.mxu0 0.0
    %321 = vmatpush1.msra.mxu0 0.0
    %322 = vmatprep.subr.mxu0 0.0
    %323 = vmatpush1.msra.mxu0 0.0
    %324 = vmatprep.subr.mxu0 0.0
    %325 = vmatpush1.msra.mxu0 0.0
    %326 = vmatprep.subr.mxu0 0.0
    %327 = vmatpush1.msra.mxu0 0.0
    %328 = vmatprep.subr.mxu0 0.0
    %329 = vmatpush1.msra.mxu0 0.0
    %330 = vmatprep.subr.mxu0 0.0
    %331 = vmatpush1.msra.mxu0 0.0
    %332 = vmatprep.subr.mxu0 0.0
    %333 = vmatpush1.msra.mxu0 0.0
    %334 = vmatprep.subr.mxu0 0.0
    %335 = vmatpush1.msra.mxu0 0.0
    %336 = vmatprep.subr.mxu0 0.0
    %337 = vmatpush1.msra.mxu0 0.0
    %338 = vmatprep.subr.mxu0 0.0
    %339 = vmatpush1.msra.mxu0 0.0
    %340 = vmatprep.subr.mxu0 0.0
    %341 = vmatpush1.msra.mxu0 0.0
    %342 = vmatprep.subr.mxu0 0.0
    %343 = vmatpush1.msra.mxu0 0.0
    %344 = vmatprep.subr.mxu0 0.0
    %345 = vmatpush1.msra.mxu0 0.0
    %346 = vmatprep.subr.mxu0 0.0
    %347 = vmatpush1.msra.mxu0 0.0
    %348 = vmatprep.subr.mxu0 0.0
    %349 = vmatpush1.msra.mxu0 0.0
    %350 = vmatprep.subr.mxu0 0.0
    %351 = vmatpush1.msra.mxu0 0.0
    %352 = vmatprep.subr.mxu0 0.0
    %353 = vmatpush1.msra.mxu0 0.0
    %354 = vmatprep.subr.mxu0 0.0
    %355 = vmatpush1.msra.mxu0 0.0
    %356 = vmatprep.subr.mxu0 0.0
    %357 = vmatpush1.msra.mxu0 0.0
    %358 = vmatprep.subr.mxu0 0.0
    %359 = vmatpush1.msra.mxu0 0.0
    %360 = vmatprep.subr.mxu0 0.0
    %361 = vmatpush1.msra.mxu0 0.0
    %362 = vmatprep.subr.mxu0 0.0
    %363 = vmatpush1.msra.mxu0 0.0
    %364 = vmatprep.subr.mxu0 0.0
    %365 = vmatpush1.msra.mxu0 0.0
    %366 = vmatprep.mubr.f32.mxu0 0.0
    %367 = vmatmul.mubr.f32.gmra.mrb[0].mxu0 %v134
    %v368 = vpop.f32.mrb[0].mxu0
    %v369 = vadd.f32 %v130, %v368
    %v370 = vpop.f32.mrb[0].mxu0
    %v371 = vadd.f32 %v130, %v370
    %372 = vdwg.mxu0
    %s373 = scalar_lea.vmem [#allocation2], 16
    %374 = vst [vmem:[%s373] sm:$0xff] %v369
    %375 = vst [vmem:[%s373 + $0x8] sm:$0xff] %v371
    // Predicated region
    $region22: #{tpu_custom_call.1} parent=1 // pred_check
      _
    $region23: #{tpu_custom_call.1} parent=1 // pred_check_branch
      %377 = sbr.rel (0) target = $region25
    $region24: #{tpu_custom_call.1} parent=1 // pred_region
      %s379 = ssub.s32 512, 512
      %380 = vsyncadd [#allocation3], %s379
      %s381 = sshll.u32 [#allocation2], 4
      %s382 = int_to_ptr.vmem [resolvable:$true] %s381
      %387 = dma.vmem_to_hbm [thread:$0]  %s382, 512, %s5, [#allocation3], 256, 256, 16
    $region25: #{tpu_custom_call.1} parent=1 // pred_fallthru
      _
    // Predicated region
    $region26: #{tpu_custom_call.1} parent=1 // pred_check
      _
    $region27: #{tpu_custom_call.1} parent=1 // pred_check_branch
      %389 = sbr.rel (0) target = $region29
    $region28: #{tpu_custom_call.1} parent=1 // pred_region
      %390 = dma.done [#allocation3], 512
    $region29: #{tpu_custom_call.1} parent=1 // pred_fallthru
      _
    %391 = vsyncpa [#allocation3], 1

</llo_original>
